<compile_context>
chip_gen: v7x
topology: tpu7x:2x2x1
jax: 0.10.0
libtpu: 0.0.40
codegen_flags: <defaults>
</compile_context>

<pallas_src>
import jax
import jax.numpy as jnp
from jax import lax
from jax.experimental import pallas as pl
from jax.experimental.pallas import tpu as pltpu


# Double-buffered VMEM budget for the streamed in+out blocks.  Kept under
# v5e's 16 MiB default scoped VMEM so no flag changes are required anywhere.
_VMEM_BLOCK_BUDGET = 10 * 1024 * 1024


def _largest_divisor_chunk(tr: int) -> int:
    """Inner compute-chunk rows: biggest power-of-two-ish divisor of tr."""
    for rc in (256, 128, 64, 32, 16, 8):
        if tr % rc == 0:
            return rc
    return tr


def _pick_tiles(batch: int, n_rows: int, c_in: int, c_out: int):
    """Pick (TB images, TR 128-pixel rows) per grid step."""
    # Double-buffered streamed bytes per (image, row-of-128-pixels).
    row_bytes = 2 * (c_in + c_out) * 128 * 4
    rows_budget = max(8, _VMEM_BLOCK_BUDGET // row_bytes)

    if n_rows >= rows_budget:
        # Big images: one image per block, as many rows as the budget allows.
        if rows_budget >= 256:
            tr = (rows_budget // 256) * 256
        else:
            tr = (rows_budget // 8) * 8
        tb = 1
    else:
        # Small images: take all rows and several images per block so each
        # grid step still moves a large, lane-dense slab.
        tr = n_rows
        tb = max(1, min(batch, rows_budget // max(n_rows, 1)))

    # Give megacore (v7x) at least two grid steps when there is enough work.
    block_bytes = tb * (c_in + c_out) * tr * 128 * 4
    if pl.cdiv(batch, tb) * pl.cdiv(n_rows, tr) < 2 and block_bytes >= (2 << 20):
        if tb >= 2:
            tb = -(-tb // 2)
        elif tr % 16 == 0:
            tr //= 2
    return tb, tr


def _make_channel_linear_kernel(c_in: int, c_out: int, tb: int, tr: int):
    """VPU kernel: y[co] = sum_ci w[co,ci]*x[ci] + b[co], pixels on (sublane, lane)."""
    rc = _largest_divisor_chunk(tr)
    n_chunks = tr // rc

    def kernel(w_ref, b_ref, x_ref, o_ref):
        # w_ref: (c_out, c_in) f32 in SMEM        (scalar weight reads)
        # b_ref: (c_out,)      f32 in SMEM
        # x_ref: (tb, c_in, tr, 128)  f32 in VMEM (dense pixel tile per channel)
        # o_ref: (tb, c_out, tr, 128) f32 in VMEM
        def one_image(img):
            # Work in rc-row chunks and re-read x from VMEM per output
            # channel: the live set per op chain is a handful of vregs
            # regardless of tr, and the extra VMEM reads (3 vld slots/cycle)
            # are fully hidden under the HBM DMA of the next block.
            for chunk in range(n_chunks):
                rows = pl.ds(chunk * rc, rc)
                for co in range(c_out):
                    acc = x_ref[img, 0, rows, :] * w_ref[co, 0]
                    for ci in range(1, c_in):
                        acc = acc + x_ref[img, ci, rows, :] * w_ref[co, ci]
                    o_ref[img, co, rows, :] = (acc + b_ref[co]).astype(o_ref.dtype)

        if tb <= 8:
            for img in range(tb):            # short fixed loop: unroll in Python
                one_image(img)
        else:
            def body(img, carry):            # many images per block: scf.for
                one_image(img)
                return carry
            lax.fori_loop(0, tb, body, 0)

    return kernel


def calculate_channel(x, weight, bias):
    """Pallas implementation of CalculateChannel(nn.Linear(C_in, C_out)).

    x:      (B, C_in, W, H) float32 (NCHW, same axis names as the PyTorch code)
    weight: (C_out, C_in)   (PyTorch nn.Linear convention)
    bias:   (C_out,)
    returns (B, C_out, W, H) float32
    """
    B, C_in, W, H = x.shape
    C_out = weight.shape[0]
    n_pix = W * H

    if x.dtype != jnp.float32:
        # TODO(synk): native bf16 path (needs %16 sublane tiles + f32 accum).
        x = x.astype(jnp.float32)

    # Split pixels into rows of 128 lanes (free view).  If W*H is not a
    # multiple of 128 we pad once; NOTE: the pad + final slice each cost an
    # extra HBM pass, so 128-aligned spatial sizes are strongly preferred.
    pad = (-n_pix) % 128
    x3 = x.reshape(B, C_in, n_pix)                      # free view (no transpose)
    if pad:
        x3 = jnp.pad(x3, ((0, 0), (0, 0), (0, pad)))
    n_pad = n_pix + pad
    n_rows = n_pad // 128
    x4 = x3.reshape(B, C_in, n_rows, 128)               # free view

    tb, tr = _pick_tiles(B, n_rows, C_in, C_out)

    w = weight.astype(jnp.float32)
    b = bias.astype(jnp.float32)

    # NOTE: for large channel counts (C >~ 64) a (pixels, C_in) @ (C_in, C_out)
    # jnp.dot (MXU) formulation is preferable to this unrolled VPU loop; the
    # tile budget above already scales TR down with C so nothing breaks.
    out4 = pl.pallas_call(
        _make_channel_linear_kernel(C_in, C_out, tb, tr),
        out_shape=jax.ShapeDtypeStruct((B, C_out, n_rows, 128), jnp.float32),
        grid=(pl.cdiv(B, tb), pl.cdiv(n_rows, tr)),
        in_specs=[
            pl.BlockSpec(memory_space=pltpu.MemorySpace.SMEM),   # weight
            pl.BlockSpec(memory_space=pltpu.MemorySpace.SMEM),   # bias
            pl.BlockSpec((tb, C_in, tr, 128), lambda bi, ri: (bi, 0, ri, 0)),
        ],
        out_specs=pl.BlockSpec((tb, C_out, tr, 128), lambda bi, ri: (bi, 0, ri, 0)),
        compiler_params=pltpu.CompilerParams(
            dimension_semantics=("parallel", "parallel"),
            vmem_limit_bytes=32 * 1024 * 1024),
    )(w, b, x4)

    out = out4.reshape(B, C_out, n_pad)                 # free view
    if pad:
        out = out[:, :, :n_pix]
    return out.reshape(B, C_out, W, H)                  # free view (no transpose)


def _reference(x, weight, bias):
    # pure-JAX reference of the PyTorch forward (inner module = Linear)
    B, C, W, H = x.shape
    x2 = jnp.transpose(x.reshape(B, C, -1), (0, 2, 1)).reshape(-1, C)
    y = x2 @ weight.T + bias
    y = jnp.transpose(y.reshape(B, W * H, -1), (0, 2, 1)).reshape(B, -1, W, H)
    return y


if __name__ == "__main__":
    key = jax.random.PRNGKey(0)
    kx, kw, kb = jax.random.split(key, 3)

    B, C_in, W, H = 2, 4, 16, 16
    C_out = 4

    x = jax.random.normal(kx, (B, C_in, W, H), dtype=jnp.float32)
    # deterministic "parameters" for the inner nn.Linear(C_in, C_out)
    weight = jax.random.normal(kw, (C_out, C_in), dtype=jnp.float32) * 0.1
    bias = jax.random.normal(kb, (C_out,), dtype=jnp.float32) * 0.1

    out = calculate_channel(x, weight, bias)
    out = jax.block_until_ready(out)

    ref = _reference(x, weight, bias)
    assert out.shape == (B, C_out, W, H)
    assert jnp.allclose(out, ref, atol=1e-5, rtol=1e-5), "mismatch vs reference"

    print("KERNEL_OK")
</pallas_src>

<mosaic_0001>
module attributes {stable_mosaic.version = 11 : i64} {
  func.func @kernel(%arg0: i32, %arg1: i32, %arg2: memref<4x4xf32, #tpu.memory_space<smem>>, %arg3: memref<4xf32, #tpu.memory_space<smem>>, %arg4: memref<2x4x2x128xf32, #tpu.memory_space<vmem>>, %arg5: memref<2x4x2x128xf32, #tpu.memory_space<vmem>>) attributes {dimension_semantics = [#tpu.dimension_semantics<parallel>, #tpu.dimension_semantics<parallel>], iteration_bounds = array<i64: 1, 1>, scalar_prefetch = 0 : i64, scratch_operands = 0 : i64, tpu.core_type = #tpu.core_type<tc>, window_params = [{transform_indices = @transform_0, window_bounds = array<i64: 4, 4>}, {transform_indices = @transform_1, window_bounds = array<i64: 4>}, {transform_indices = @transform_2, window_bounds = array<i64: 2, 4, 2, 128>}, {transform_indices = @transform_3, window_bounds = array<i64: 2, 4, 2, 128>}]} {
    %c0 = arith.constant 0 : index
    %c0_0 = arith.constant 0 : index
    %c0_1 = arith.constant 0 : index
    %c0_2 = arith.constant 0 : index
    %0 = vector.load %arg4[%c0, %c0_0, %c0_1, %c0_2] : memref<2x4x2x128xf32, #tpu.memory_space<vmem>>, vector<1x1x2x128xf32>
    %1 = vector.shape_cast %0 : vector<1x1x2x128xf32> to vector<2x128xf32>
    %c0_3 = arith.constant 0 : index
    %c0_4 = arith.constant 0 : index
    %2 = memref.load %arg2[%c0_3, %c0_4] : memref<4x4xf32, #tpu.memory_space<smem>>
    %3 = vector.broadcast %2 : f32 to vector<2x128xf32>
    %4 = arith.mulf %1, %3 : vector<2x128xf32>
    %c0_5 = arith.constant 0 : index
    %c1 = arith.constant 1 : index
    %c0_6 = arith.constant 0 : index
    %c0_7 = arith.constant 0 : index
    %5 = vector.load %arg4[%c0_5, %c1, %c0_6, %c0_7] : memref<2x4x2x128xf32, #tpu.memory_space<vmem>>, vector<1x1x2x128xf32>
    %6 = vector.shape_cast %5 : vector<1x1x2x128xf32> to vector<2x128xf32>
    %c0_8 = arith.constant 0 : index
    %c1_9 = arith.constant 1 : index
    %7 = memref.load %arg2[%c0_8, %c1_9] : memref<4x4xf32, #tpu.memory_space<smem>>
    %8 = vector.broadcast %7 : f32 to vector<2x128xf32>
    %9 = arith.mulf %6, %8 : vector<2x128xf32>
    %10 = arith.addf %4, %9 : vector<2x128xf32>
    %c0_10 = arith.constant 0 : index
    %c2 = arith.constant 2 : index
    %c0_11 = arith.constant 0 : index
    %c0_12 = arith.constant 0 : index
    %11 = vector.load %arg4[%c0_10, %c2, %c0_11, %c0_12] : memref<2x4x2x128xf32, #tpu.memory_space<vmem>>, vector<1x1x2x128xf32>
    %12 = vector.shape_cast %11 : vector<1x1x2x128xf32> to vector<2x128xf32>
    %c0_13 = arith.constant 0 : index
    %c2_14 = arith.constant 2 : index
    %13 = memref.load %arg2[%c0_13, %c2_14] : memref<4x4xf32, #tpu.memory_space<smem>>
    %14 = vector.broadcast %13 : f32 to vector<2x128xf32>
    %15 = arith.mulf %12, %14 : vector<2x128xf32>
    %16 = arith.addf %10, %15 : vector<2x128xf32>
    %c0_15 = arith.constant 0 : index
    %c3 = arith.constant 3 : index
    %c0_16 = arith.constant 0 : index
    %c0_17 = arith.constant 0 : index
    %17 = vector.load %arg4[%c0_15, %c3, %c0_16, %c0_17] : memref<2x4x2x128xf32, #tpu.memory_space<vmem>>, vector<1x1x2x128xf32>
    %18 = vector.shape_cast %17 : vector<1x1x2x128xf32> to vector<2x128xf32>
    %c0_18 = arith.constant 0 : index
    %c3_19 = arith.constant 3 : index
    %19 = memref.load %arg2[%c0_18, %c3_19] : memref<4x4xf32, #tpu.memory_space<smem>>
    %20 = vector.broadcast %19 : f32 to vector<2x128xf32>
    %21 = arith.mulf %18, %20 : vector<2x128xf32>
    %22 = arith.addf %16, %21 : vector<2x128xf32>
    %c0_20 = arith.constant 0 : index
    %23 = memref.load %arg3[%c0_20] : memref<4xf32, #tpu.memory_space<smem>>
    %24 = vector.broadcast %23 : f32 to vector<2x128xf32>
    %25 = arith.addf %22, %24 : vector<2x128xf32>
    %c0_21 = arith.constant 0 : index
    %c0_22 = arith.constant 0 : index
    %c0_23 = arith.constant 0 : index
    %c0_24 = arith.constant 0 : index
    %26 = vector.load %arg5[%c0_21, %c0_22, %c0_23, %c0_24] : memref<2x4x2x128xf32, #tpu.memory_space<vmem>>, vector<1x1x2x128xf32>
    %27 = vector.shape_cast %26 : vector<1x1x2x128xf32> to vector<2x128xf32>
    %28 = vector.shape_cast %25 : vector<2x128xf32> to vector<1x1x2x128xf32>
    tpu.vector_store %arg5[%c0_21, %c0_22, %c0_23, %c0_24], %28 {strides = array<i32>} : memref<2x4x2x128xf32, #tpu.memory_space<vmem>>, vector<1x1x2x128xf32>,
    %c0_25 = arith.constant 0 : index
    %c0_26 = arith.constant 0 : index
    %c0_27 = arith.constant 0 : index
    %c0_28 = arith.constant 0 : index
    %29 = vector.load %arg4[%c0_25, %c0_26, %c0_27, %c0_28] : memref<2x4x2x128xf32, #tpu.memory_space<vmem>>, vector<1x1x2x128xf32>
    %30 = vector.shape_cast %29 : vector<1x1x2x128xf32> to vector<2x128xf32>
    %c1_29 = arith.constant 1 : index
    %c0_30 = arith.constant 0 : index
    %31 = memref.load %arg2[%c1_29, %c0_30] : memref<4x4xf32, #tpu.memory_space<smem>>
    %32 = vector.broadcast %31 : f32 to vector<2x128xf32>
    %33 = arith.mulf %30, %32 : vector<2x128xf32>
    %c0_31 = arith.constant 0 : index
    %c1_32 = arith.constant 1 : index
    %c0_33 = arith.constant 0 : index
    %c0_34 = arith.constant 0 : index
    %34 = vector.load %arg4[%c0_31, %c1_32, %c0_33, %c0_34] : memref<2x4x2x128xf32, #tpu.memory_space<vmem>>, vector<1x1x2x128xf32>
    %35 = vector.shape_cast %34 : vector<1x1x2x128xf32> to vector<2x128xf32>
    %c1_35 = arith.constant 1 : index
    %c1_36 = arith.constant 1 : index
    %36 = memref.load %arg2[%c1_35, %c1_36] : memref<4x4xf32, #tpu.memory_space<smem>>
    %37 = vector.broadcast %36 : f32 to vector<2x128xf32>
    %38 = arith.mulf %35, %37 : vector<2x128xf32>
    %39 = arith.addf %33, %38 : vector<2x128xf32>
    %c0_37 = arith.constant 0 : index
    %c2_38 = arith.constant 2 : index
    %c0_39 = arith.constant 0 : index
    %c0_40 = arith.constant 0 : index
    %40 = vector.load %arg4[%c0_37, %c2_38, %c0_39, %c0_40] : memref<2x4x2x128xf32, #tpu.memory_space<vmem>>, vector<1x1x2x128xf32>
    %41 = vector.shape_cast %40 : vector<1x1x2x128xf32> to vector<2x128xf32>
    %c1_41 = arith.constant 1 : index
    %c2_42 = arith.constant 2 : index
    %42 = memref.load %arg2[%c1_41, %c2_42] : memref<4x4xf32, #tpu.memory_space<smem>>
    %43 = vector.broadcast %42 : f32 to vector<2x128xf32>
    %44 = arith.mulf %41, %43 : vector<2x128xf32>
    %45 = arith.addf %39, %44 : vector<2x128xf32>
    %c0_43 = arith.constant 0 : index
    %c3_44 = arith.constant 3 : index
    %c0_45 = arith.constant 0 : index
    %c0_46 = arith.constant 0 : index
    %46 = vector.load %arg4[%c0_43, %c3_44, %c0_45, %c0_46] : memref<2x4x2x128xf32, #tpu.memory_space<vmem>>, vector<1x1x2x128xf32>
    %47 = vector.shape_cast %46 : vector<1x1x2x128xf32> to vector<2x128xf32>
    %c1_47 = arith.constant 1 : index
    %c3_48 = arith.constant 3 : index
    %48 = memref.load %arg2[%c1_47, %c3_48] : memref<4x4xf32, #tpu.memory_space<smem>>
    %49 = vector.broadcast %48 : f32 to vector<2x128xf32>
    %50 = arith.mulf %47, %49 : vector<2x128xf32>
    %51 = arith.addf %45, %50 : vector<2x128xf32>
    %c1_49 = arith.constant 1 : index
    %52 = memref.load %arg3[%c1_49] : memref<4xf32, #tpu.memory_space<smem>>
    %53 = vector.broadcast %52 : f32 to vector<2x128xf32>
    %54 = arith.addf %51, %53 : vector<2x128xf32>
    %c0_50 = arith.constant 0 : index
    %c1_51 = arith.constant 1 : index
    %c0_52 = arith.constant 0 : index
    %c0_53 = arith.constant 0 : index
    %55 = vector.load %arg5[%c0_50, %c1_51, %c0_52, %c0_53] : memref<2x4x2x128xf32, #tpu.memory_space<vmem>>, vector<1x1x2x128xf32>
    %56 = vector.shape_cast %55 : vector<1x1x2x128xf32> to vector<2x128xf32>
    %57 = vector.shape_cast %54 : vector<2x128xf32> to vector<1x1x2x128xf32>
    tpu.vector_store %arg5[%c0_50, %c1_51, %c0_52, %c0_53], %57 {strides = array<i32>} : memref<2x4x2x128xf32, #tpu.memory_space<vmem>>, vector<1x1x2x128xf32>,
    %c0_54 = arith.constant 0 : index
    %c0_55 = arith.constant 0 : index
    %c0_56 = arith.constant 0 : index
    %c0_57 = arith.constant 0 : index
    %58 = vector.load %arg4[%c0_54, %c0_55, %c0_56, %c0_57] : memref<2x4x2x128xf32, #tpu.memory_space<vmem>>, vector<1x1x2x128xf32>
    %59 = vector.shape_cast %58 : vector<1x1x2x128xf32> to vector<2x128xf32>
    %c2_58 = arith.constant 2 : index
    %c0_59 = arith.constant 0 : index
    %60 = memref.load %arg2[%c2_58, %c0_59] : memref<4x4xf32, #tpu.memory_space<smem>>
    %61 = vector.broadcast %60 : f32 to vector<2x128xf32>
    %62 = arith.mulf %59, %61 : vector<2x128xf32>
    %c0_60 = arith.constant 0 : index
    %c1_61 = arith.constant 1 : index
    %c0_62 = arith.constant 0 : index
    %c0_63 = arith.constant 0 : index
    %63 = vector.load %arg4[%c0_60, %c1_61, %c0_62, %c0_63] : memref<2x4x2x128xf32, #tpu.memory_space<vmem>>, vector<1x1x2x128xf32>
    %64 = vector.shape_cast %63 : vector<1x1x2x128xf32> to vector<2x128xf32>
    %c2_64 = arith.constant 2 : index
    %c1_65 = arith.constant 1 : index
    %65 = memref.load %arg2[%c2_64, %c1_65] : memref<4x4xf32, #tpu.memory_space<smem>>
    %66 = vector.broadcast %65 : f32 to vector<2x128xf32>
    %67 = arith.mulf %64, %66 : vector<2x128xf32>
    %68 = arith.addf %62, %67 : vector<2x128xf32>
    %c0_66 = arith.constant 0 : index
    %c2_67 = arith.constant 2 : index
    %c0_68 = arith.constant 0 : index
    %c0_69 = arith.constant 0 : index
    %69 = vector.load %arg4[%c0_66, %c2_67, %c0_68, %c0_69] : memref<2x4x2x128xf32, #tpu.memory_space<vmem>>, vector<1x1x2x128xf32>
    %70 = vector.shape_cast %69 : vector<1x1x2x128xf32> to vector<2x128xf32>
    %c2_70 = arith.constant 2 : index
    %c2_71 = arith.constant 2 : index
    %71 = memref.load %arg2[%c2_70, %c2_71] : memref<4x4xf32, #tpu.memory_space<smem>>
    %72 = vector.broadcast %71 : f32 to vector<2x128xf32>
    %73 = arith.mulf %70, %72 : vector<2x128xf32>
    %74 = arith.addf %68, %73 : vector<2x128xf32>
    %c0_72 = arith.constant 0 : index
    %c3_73 = arith.constant 3 : index
    %c0_74 = arith.constant 0 : index
    %c0_75 = arith.constant 0 : index
    %75 = vector.load %arg4[%c0_72, %c3_73, %c0_74, %c0_75] : memref<2x4x2x128xf32, #tpu.memory_space<vmem>>, vector<1x1x2x128xf32>
    %76 = vector.shape_cast %75 : vector<1x1x2x128xf32> to vector<2x128xf32>
    %c2_76 = arith.constant 2 : index
    %c3_77 = arith.constant 3 : index
    %77 = memref.load %arg2[%c2_76, %c3_77] : memref<4x4xf32, #tpu.memory_space<smem>>
    %78 = vector.broadcast %77 : f32 to vector<2x128xf32>
    %79 = arith.mulf %76, %78 : vector<2x128xf32>
    %80 = arith.addf %74, %79 : vector<2x128xf32>
    %c2_78 = arith.constant 2 : index
    %81 = memref.load %arg3[%c2_78] : memref<4xf32, #tpu.memory_space<smem>>
    %82 = vector.broadcast %81 : f32 to vector<2x128xf32>
    %83 = arith.addf %80, %82 : vector<2x128xf32>
    %c0_79 = arith.constant 0 : index
    %c2_80 = arith.constant 2 : index
    %c0_81 = arith.constant 0 : index
    %c0_82 = arith.constant 0 : index
    %84 = vector.load %arg5[%c0_79, %c2_80, %c0_81, %c0_82] : memref<2x4x2x128xf32, #tpu.memory_space<vmem>>, vector<1x1x2x128xf32>
    %85 = vector.shape_cast %84 : vector<1x1x2x128xf32> to vector<2x128xf32>
    %86 = vector.shape_cast %83 : vector<2x128xf32> to vector<1x1x2x128xf32>
    tpu.vector_store %arg5[%c0_79, %c2_80, %c0_81, %c0_82], %86 {strides = array<i32>} : memref<2x4x2x128xf32, #tpu.memory_space<vmem>>, vector<1x1x2x128xf32>,
    %c0_83 = arith.constant 0 : index
    %c0_84 = arith.constant 0 : index
    %c0_85 = arith.constant 0 : index
    %c0_86 = arith.constant 0 : index
    %87 = vector.load %arg4[%c0_83, %c0_84, %c0_85, %c0_86] : memref<2x4x2x128xf32, #tpu.memory_space<vmem>>, vector<1x1x2x128xf32>
    %88 = vector.shape_cast %87 : vector<1x1x2x128xf32> to vector<2x128xf32>
    %c3_87 = arith.constant 3 : index
    %c0_88 = arith.constant 0 : index
    %89 = memref.load %arg2[%c3_87, %c0_88] : memref<4x4xf32, #tpu.memory_space<smem>>
    %90 = vector.broadcast %89 : f32 to vector<2x128xf32>
    %91 = arith.mulf %88, %90 : vector<2x128xf32>
    %c0_89 = arith.constant 0 : index
    %c1_90 = arith.constant 1 : index
    %c0_91 = arith.constant 0 : index
    %c0_92 = arith.constant 0 : index
    %92 = vector.load %arg4[%c0_89, %c1_90, %c0_91, %c0_92] : memref<2x4x2x128xf32, #tpu.memory_space<vmem>>, vector<1x1x2x128xf32>
    %93 = vector.shape_cast %92 : vector<1x1x2x128xf32> to vector<2x128xf32>
    %c3_93 = arith.constant 3 : index
    %c1_94 = arith.constant 1 : index
    %94 = memref.load %arg2[%c3_93, %c1_94] : memref<4x4xf32, #tpu.memory_space<smem>>
    %95 = vector.broadcast %94 : f32 to vector<2x128xf32>
    %96 = arith.mulf %93, %95 : vector<2x128xf32>
    %97 = arith.addf %91, %96 : vector<2x128xf32>
    %c0_95 = arith.constant 0 : index
    %c2_96 = arith.constant 2 : index
    %c0_97 = arith.constant 0 : index
    %c0_98 = arith.constant 0 : index
    %98 = vector.load %arg4[%c0_95, %c2_96, %c0_97, %c0_98] : memref<2x4x2x128xf32, #tpu.memory_space<vmem>>, vector<1x1x2x128xf32>
    %99 = vector.shape_cast %98 : vector<1x1x2x128xf32> to vector<2x128xf32>
    %c3_99 = arith.constant 3 : index
    %c2_100 = arith.constant 2 : index
    %100 = memref.load %arg2[%c3_99, %c2_100] : memref<4x4xf32, #tpu.memory_space<smem>>
    %101 = vector.broadcast %100 : f32 to vector<2x128xf32>
    %102 = arith.mulf %99, %101 : vector<2x128xf32>
    %103 = arith.addf %97, %102 : vector<2x128xf32>
    %c0_101 = arith.constant 0 : index
    %c3_102 = arith.constant 3 : index
    %c0_103 = arith.constant 0 : index
    %c0_104 = arith.constant 0 : index
    %104 = vector.load %arg4[%c0_101, %c3_102, %c0_103, %c0_104] : memref<2x4x2x128xf32, #tpu.memory_space<vmem>>, vector<1x1x2x128xf32>
    %105 = vector.shape_cast %104 : vector<1x1x2x128xf32> to vector<2x128xf32>
    %c3_105 = arith.constant 3 : index
    %c3_106 = arith.constant 3 : index
    %106 = memref.load %arg2[%c3_105, %c3_106] : memref<4x4xf32, #tpu.memory_space<smem>>
    %107 = vector.broadcast %106 : f32 to vector<2x128xf32>
    %108 = arith.mulf %105, %107 : vector<2x128xf32>
    %109 = arith.addf %103, %108 : vector<2x128xf32>
    %c3_107 = arith.constant 3 : index
    %110 = memref.load %arg3[%c3_107] : memref<4xf32, #tpu.memory_space<smem>>
    %111 = vector.broadcast %110 : f32 to vector<2x128xf32>
    %112 = arith.addf %109, %111 : vector<2x128xf32>
    %c0_108 = arith.constant 0 : index
    %c3_109 = arith.constant 3 : index
    %c0_110 = arith.constant 0 : index
    %c0_111 = arith.constant 0 : index
    %113 = vector.load %arg5[%c0_108, %c3_109, %c0_110, %c0_111] : memref<2x4x2x128xf32, #tpu.memory_space<vmem>>, vector<1x1x2x128xf32>
    %114 = vector.shape_cast %113 : vector<1x1x2x128xf32> to vector<2x128xf32>
    %115 = vector.shape_cast %112 : vector<2x128xf32> to vector<1x1x2x128xf32>
    tpu.vector_store %arg5[%c0_108, %c3_109, %c0_110, %c0_111], %115 {strides = array<i32>} : memref<2x4x2x128xf32, #tpu.memory_space<vmem>>, vector<1x1x2x128xf32>,
    %c1_112 = arith.constant 1 : index
    %c0_113 = arith.constant 0 : index
    %c0_114 = arith.constant 0 : index
    %c0_115 = arith.constant 0 : index
    %116 = vector.load %arg4[%c1_112, %c0_113, %c0_114, %c0_115] : memref<2x4x2x128xf32, #tpu.memory_space<vmem>>, vector<1x1x2x128xf32>
    %117 = vector.shape_cast %116 : vector<1x1x2x128xf32> to vector<2x128xf32>
    %c0_116 = arith.constant 0 : index
    %c0_117 = arith.constant 0 : index
    %118 = memref.load %arg2[%c0_116, %c0_117] : memref<4x4xf32, #tpu.memory_space<smem>>
    %119 = vector.broadcast %118 : f32 to vector<2x128xf32>
    %120 = arith.mulf %117, %119 : vector<2x128xf32>
    %c1_118 = arith.constant 1 : index
    %c1_119 = arith.constant 1 : index
    %c0_120 = arith.constant 0 : index
    %c0_121 = arith.constant 0 : index
    %121 = vector.load %arg4[%c1_118, %c1_119, %c0_120, %c0_121] : memref<2x4x2x128xf32, #tpu.memory_space<vmem>>, vector<1x1x2x128xf32>
    %122 = vector.shape_cast %121 : vector<1x1x2x128xf32> to vector<2x128xf32>
    %c0_122 = arith.constant 0 : index
    %c1_123 = arith.constant 1 : index
    %123 = memref.load %arg2[%c0_122, %c1_123] : memref<4x4xf32, #tpu.memory_space<smem>>
    %124 = vector.broadcast %123 : f32 to vector<2x128xf32>
    %125 = arith.mulf %122, %124 : vector<2x128xf32>
    %126 = arith.addf %120, %125 : vector<2x128xf32>
    %c1_124 = arith.constant 1 : index
    %c2_125 = arith.constant 2 : index
    %c0_126 = arith.constant 0 : index
    %c0_127 = arith.constant 0 : index
    %127 = vector.load %arg4[%c1_124, %c2_125, %c0_126, %c0_127] : memref<2x4x2x128xf32, #tpu.memory_space<vmem>>, vector<1x1x2x128xf32>
    %128 = vector.shape_cast %127 : vector<1x1x2x128xf32> to vector<2x128xf32>
    %c0_128 = arith.constant 0 : index
    %c2_129 = arith.constant 2 : index
    %129 = memref.load %arg2[%c0_128, %c2_129] : memref<4x4xf32, #tpu.memory_space<smem>>
    %130 = vector.broadcast %129 : f32 to vector<2x128xf32>
    %131 = arith.mulf %128, %130 : vector<2x128xf32>
    %132 = arith.addf %126, %131 : vector<2x128xf32>
    %c1_130 = arith.constant 1 : index
    %c3_131 = arith.constant 3 : index
    %c0_132 = arith.constant 0 : index
    %c0_133 = arith.constant 0 : index
    %133 = vector.load %arg4[%c1_130, %c3_131, %c0_132, %c0_133] : memref<2x4x2x128xf32, #tpu.memory_space<vmem>>, vector<1x1x2x128xf32>
    %134 = vector.shape_cast %133 : vector<1x1x2x128xf32> to vector<2x128xf32>
    %c0_134 = arith.constant 0 : index
    %c3_135 = arith.constant 3 : index
    %135 = memref.load %arg2[%c0_134, %c3_135] : memref<4x4xf32, #tpu.memory_space<smem>>
    %136 = vector.broadcast %135 : f32 to vector<2x128xf32>
    %137 = arith.mulf %134, %136 : vector<2x128xf32>
    %138 = arith.addf %132, %137 : vector<2x128xf32>
    %c0_136 = arith.constant 0 : index
    %139 = memref.load %arg3[%c0_136] : memref<4xf32, #tpu.memory_space<smem>>
    %140 = vector.broadcast %139 : f32 to vector<2x128xf32>
    %141 = arith.addf %138, %140 : vector<2x128xf32>
    %c1_137 = arith.constant 1 : index
    %c0_138 = arith.constant 0 : index
    %c0_139 = arith.constant 0 : index
    %c0_140 = arith.constant 0 : index
    %142 = vector.load %arg5[%c1_137, %c0_138, %c0_139, %c0_140] : memref<2x4x2x128xf32, #tpu.memory_space<vmem>>, vector<1x1x2x128xf32>
    %143 = vector.shape_cast %142 : vector<1x1x2x128xf32> to vector<2x128xf32>
    %144 = vector.shape_cast %141 : vector<2x128xf32> to vector<1x1x2x128xf32>
    tpu.vector_store %arg5[%c1_137, %c0_138, %c0_139, %c0_140], %144 {strides = array<i32>} : memref<2x4x2x128xf32, #tpu.memory_space<vmem>>, vector<1x1x2x128xf32>,
    %c1_141 = arith.constant 1 : index
    %c0_142 = arith.constant 0 : index
    %c0_143 = arith.constant 0 : index
    %c0_144 = arith.constant 0 : index
    %145 = vector.load %arg4[%c1_141, %c0_142, %c0_143, %c0_144] : memref<2x4x2x128xf32, #tpu.memory_space<vmem>>, vector<1x1x2x128xf32>
    %146 = vector.shape_cast %145 : vector<1x1x2x128xf32> to vector<2x128xf32>
    %c1_145 = arith.constant 1 : index
    %c0_146 = arith.constant 0 : index
    %147 = memref.load %arg2[%c1_145, %c0_146] : memref<4x4xf32, #tpu.memory_space<smem>>
    %148 = vector.broadcast %147 : f32 to vector<2x128xf32>
    %149 = arith.mulf %146, %148 : vector<2x128xf32>
    %c1_147 = arith.constant 1 : index
    %c1_148 = arith.constant 1 : index
    %c0_149 = arith.constant 0 : index
    %c0_150 = arith.constant 0 : index
    %150 = vector.load %arg4[%c1_147, %c1_148, %c0_149, %c0_150] : memref<2x4x2x128xf32, #tpu.memory_space<vmem>>, vector<1x1x2x128xf32>
    %151 = vector.shape_cast %150 : vector<1x1x2x128xf32> to vector<2x128xf32>
    %c1_151 = arith.constant 1 : index
    %c1_152 = arith.constant 1 : index
    %152 = memref.load %arg2[%c1_151, %c1_152] : memref<4x4xf32, #tpu.memory_space<smem>>
    %153 = vector.broadcast %152 : f32 to vector<2x128xf32>
    %154 = arith.mulf %151, %153 : vector<2x128xf32>
    %155 = arith.addf %149, %154 : vector<2x128xf32>
    %c1_153 = arith.constant 1 : index
    %c2_154 = arith.constant 2 : index
    %c0_155 = arith.constant 0 : index
    %c0_156 = arith.constant 0 : index
    %156 = vector.load %arg4[%c1_153, %c2_154, %c0_155, %c0_156] : memref<2x4x2x128xf32, #tpu.memory_space<vmem>>, vector<1x1x2x128xf32>
    %157 = vector.shape_cast %156 : vector<1x1x2x128xf32> to vector<2x128xf32>
    %c1_157 = arith.constant 1 : index
    %c2_158 = arith.constant 2 : index
    %158 = memref.load %arg2[%c1_157, %c2_158] : memref<4x4xf32, #tpu.memory_space<smem>>
    %159 = vector.broadcast %158 : f32 to vector<2x128xf32>
    %160 = arith.mulf %157, %159 : vector<2x128xf32>
    %161 = arith.addf %155, %160 : vector<2x128xf32>
    %c1_159 = arith.constant 1 : index
    %c3_160 = arith.constant 3 : index
    %c0_161 = arith.constant 0 : index
    %c0_162 = arith.constant 0 : index
    %162 = vector.load %arg4[%c1_159, %c3_160, %c0_161, %c0_162] : memref<2x4x2x128xf32, #tpu.memory_space<vmem>>, vector<1x1x2x128xf32>
    %163 = vector.shape_cast %162 : vector<1x1x2x128xf32> to vector<2x128xf32>
    %c1_163 = arith.constant 1 : index
    %c3_164 = arith.constant 3 : index
    %164 = memref.load %arg2[%c1_163, %c3_164] : memref<4x4xf32, #tpu.memory_space<smem>>
    %165 = vector.broadcast %164 : f32 to vector<2x128xf32>
    %166 = arith.mulf %163, %165 : vector<2x128xf32>
    %167 = arith.addf %161, %166 : vector<2x128xf32>
    %c1_165 = arith.constant 1 : index
    %168 = memref.load %arg3[%c1_165] : memref<4xf32, #tpu.memory_space<smem>>
    %169 = vector.broadcast %168 : f32 to vector<2x128xf32>
    %170 = arith.addf %167, %169 : vector<2x128xf32>
    %c1_166 = arith.constant 1 : index
    %c1_167 = arith.constant 1 : index
    %c0_168 = arith.constant 0 : index
    %c0_169 = arith.constant 0 : index
    %171 = vector.load %arg5[%c1_166, %c1_167, %c0_168, %c0_169] : memref<2x4x2x128xf32, #tpu.memory_space<vmem>>, vector<1x1x2x128xf32>
    %172 = vector.shape_cast %171 : vector<1x1x2x128xf32> to vector<2x128xf32>
    %173 = vector.shape_cast %170 : vector<2x128xf32> to vector<1x1x2x128xf32>
    tpu.vector_store %arg5[%c1_166, %c1_167, %c0_168, %c0_169], %173 {strides = array<i32>} : memref<2x4x2x128xf32, #tpu.memory_space<vmem>>, vector<1x1x2x128xf32>,
    %c1_170 = arith.constant 1 : index
    %c0_171 = arith.constant 0 : index
    %c0_172 = arith.constant 0 : index
    %c0_173 = arith.constant 0 : index
    %174 = vector.load %arg4[%c1_170, %c0_171, %c0_172, %c0_173] : memref<2x4x2x128xf32, #tpu.memory_space<vmem>>, vector<1x1x2x128xf32>
    %175 = vector.shape_cast %174 : vector<1x1x2x128xf32> to vector<2x128xf32>
    %c2_174 = arith.constant 2 : index
    %c0_175 = arith.constant 0 : index
    %176 = memref.load %arg2[%c2_174, %c0_175] : memref<4x4xf32, #tpu.memory_space<smem>>
    %177 = vector.broadcast %176 : f32 to vector<2x128xf32>
    %178 = arith.mulf %175, %177 : vector<2x128xf32>
    %c1_176 = arith.constant 1 : index
    %c1_177 = arith.constant 1 : index
    %c0_178 = arith.constant 0 : index
    %c0_179 = arith.constant 0 : index
    %179 = vector.load %arg4[%c1_176, %c1_177, %c0_178, %c0_179] : memref<2x4x2x128xf32, #tpu.memory_space<vmem>>, vector<1x1x2x128xf32>
    %180 = vector.shape_cast %179 : vector<1x1x2x128xf32> to vector<2x128xf32>
    %c2_180 = arith.constant 2 : index
    %c1_181 = arith.constant 1 : index
    %181 = memref.load %arg2[%c2_180, %c1_181] : memref<4x4xf32, #tpu.memory_space<smem>>
    %182 = vector.broadcast %181 : f32 to vector<2x128xf32>
    %183 = arith.mulf %180, %182 : vector<2x128xf32>
    %184 = arith.addf %178, %183 : vector<2x128xf32>
    %c1_182 = arith.constant 1 : index
    %c2_183 = arith.constant 2 : index
    %c0_184 = arith.constant 0 : index
    %c0_185 = arith.constant 0 : index
    %185 = vector.load %arg4[%c1_182, %c2_183, %c0_184, %c0_185] : memref<2x4x2x128xf32, #tpu.memory_space<vmem>>, vector<1x1x2x128xf32>
    %186 = vector.shape_cast %185 : vector<1x1x2x128xf32> to vector<2x128xf32>
    %c2_186 = arith.constant 2 : index
    %c2_187 = arith.constant 2 : index
    %187 = memref.load %arg2[%c2_186, %c2_187] : memref<4x4xf32, #tpu.memory_space<smem>>
    %188 = vector.broadcast %187 : f32 to vector<2x128xf32>
    %189 = arith.mulf %186, %188 : vector<2x128xf32>
    %190 = arith.addf %184, %189 : vector<2x128xf32>
    %c1_188 = arith.constant 1 : index
    %c3_189 = arith.constant 3 : index
    %c0_190 = arith.constant 0 : index
    %c0_191 = arith.constant 0 : index
    %191 = vector.load %arg4[%c1_188, %c3_189, %c0_190, %c0_191] : memref<2x4x2x128xf32, #tpu.memory_space<vmem>>, vector<1x1x2x128xf32>
    %192 = vector.shape_cast %191 : vector<1x1x2x128xf32> to vector<2x128xf32>
    %c2_192 = arith.constant 2 : index
    %c3_193 = arith.constant 3 : index
    %193 = memref.load %arg2[%c2_192, %c3_193] : memref<4x4xf32, #tpu.memory_space<smem>>
    %194 = vector.broadcast %193 : f32 to vector<2x128xf32>
    %195 = arith.mulf %192, %194 : vector<2x128xf32>
    %196 = arith.addf %190, %195 : vector<2x128xf32>
    %c2_194 = arith.constant 2 : index
    %197 = memref.load %arg3[%c2_194] : memref<4xf32, #tpu.memory_space<smem>>
    %198 = vector.broadcast %197 : f32 to vector<2x128xf32>
    %199 = arith.addf %196, %198 : vector<2x128xf32>
    %c1_195 = arith.constant 1 : index
    %c2_196 = arith.constant 2 : index
    %c0_197 = arith.constant 0 : index
    %c0_198 = arith.constant 0 : index
    %200 = vector.load %arg5[%c1_195, %c2_196, %c0_197, %c0_198] : memref<2x4x2x128xf32, #tpu.memory_space<vmem>>, vector<1x1x2x128xf32>
    %201 = vector.shape_cast %200 : vector<1x1x2x128xf32> to vector<2x128xf32>
    %202 = vector.shape_cast %199 : vector<2x128xf32> to vector<1x1x2x128xf32>
    tpu.vector_store %arg5[%c1_195, %c2_196, %c0_197, %c0_198], %202 {strides = array<i32>} : memref<2x4x2x128xf32, #tpu.memory_space<vmem>>, vector<1x1x2x128xf32>,
    %c1_199 = arith.constant 1 : index
    %c0_200 = arith.constant 0 : index
    %c0_201 = arith.constant 0 : index
    %c0_202 = arith.constant 0 : index
    %203 = vector.load %arg4[%c1_199, %c0_200, %c0_201, %c0_202] : memref<2x4x2x128xf32, #tpu.memory_space<vmem>>, vector<1x1x2x128xf32>
    %204 = vector.shape_cast %203 : vector<1x1x2x128xf32> to vector<2x128xf32>
    %c3_203 = arith.constant 3 : index
    %c0_204 = arith.constant 0 : index
    %205 = memref.load %arg2[%c3_203, %c0_204] : memref<4x4xf32, #tpu.memory_space<smem>>
    %206 = vector.broadcast %205 : f32 to vector<2x128xf32>
    %207 = arith.mulf %204, %206 : vector<2x128xf32>
    %c1_205 = arith.constant 1 : index
    %c1_206 = arith.constant 1 : index
    %c0_207 = arith.constant 0 : index
    %c0_208 = arith.constant 0 : index
    %208 = vector.load %arg4[%c1_205, %c1_206, %c0_207, %c0_208] : memref<2x4x2x128xf32, #tpu.memory_space<vmem>>, vector<1x1x2x128xf32>
    %209 = vector.shape_cast %208 : vector<1x1x2x128xf32> to vector<2x128xf32>
    %c3_209 = arith.constant 3 : index
    %c1_210 = arith.constant 1 : index
    %210 = memref.load %arg2[%c3_209, %c1_210] : memref<4x4xf32, #tpu.memory_space<smem>>
    %211 = vector.broadcast %210 : f32 to vector<2x128xf32>
    %212 = arith.mulf %209, %211 : vector<2x128xf32>
    %213 = arith.addf %207, %212 : vector<2x128xf32>
    %c1_211 = arith.constant 1 : index
    %c2_212 = arith.constant 2 : index
    %c0_213 = arith.constant 0 : index
    %c0_214 = arith.constant 0 : index
    %214 = vector.load %arg4[%c1_211, %c2_212, %c0_213, %c0_214] : memref<2x4x2x128xf32, #tpu.memory_space<vmem>>, vector<1x1x2x128xf32>
    %215 = vector.shape_cast %214 : vector<1x1x2x128xf32> to vector<2x128xf32>
    %c3_215 = arith.constant 3 : index
    %c2_216 = arith.constant 2 : index
    %216 = memref.load %arg2[%c3_215, %c2_216] : memref<4x4xf32, #tpu.memory_space<smem>>
    %217 = vector.broadcast %216 : f32 to vector<2x128xf32>
    %218 = arith.mulf %215, %217 : vector<2x128xf32>
    %219 = arith.addf %213, %218 : vector<2x128xf32>
    %c1_217 = arith.constant 1 : index
    %c3_218 = arith.constant 3 : index
    %c0_219 = arith.constant 0 : index
    %c0_220 = arith.constant 0 : index
    %220 = vector.load %arg4[%c1_217, %c3_218, %c0_219, %c0_220] : memref<2x4x2x128xf32, #tpu.memory_space<vmem>>, vector<1x1x2x128xf32>
    %221 = vector.shape_cast %220 : vector<1x1x2x128xf32> to vector<2x128xf32>
    %c3_221 = arith.constant 3 : index
    %c3_222 = arith.constant 3 : index
    %222 = memref.load %arg2[%c3_221, %c3_222] : memref<4x4xf32, #tpu.memory_space<smem>>
    %223 = vector.broadcast %222 : f32 to vector<2x128xf32>
    %224 = arith.mulf %221, %223 : vector<2x128xf32>
    %225 = arith.addf %219, %224 : vector<2x128xf32>
    %c3_223 = arith.constant 3 : index
    %226 = memref.load %arg3[%c3_223] : memref<4xf32, #tpu.memory_space<smem>>
    %227 = vector.broadcast %226 : f32 to vector<2x128xf32>
    %228 = arith.addf %225, %227 : vector<2x128xf32>
    %c1_224 = arith.constant 1 : index
    %c3_225 = arith.constant 3 : index
    %c0_226 = arith.constant 0 : index
    %c0_227 = arith.constant 0 : index
    %229 = vector.load %arg5[%c1_224, %c3_225, %c0_226, %c0_227] : memref<2x4x2x128xf32, #tpu.memory_space<vmem>>, vector<1x1x2x128xf32>
    %230 = vector.shape_cast %229 : vector<1x1x2x128xf32> to vector<2x128xf32>
    %231 = vector.shape_cast %228 : vector<2x128xf32> to vector<1x1x2x128xf32>
    tpu.vector_store %arg5[%c1_224, %c3_225, %c0_226, %c0_227], %231 {strides = array<i32>} : memref<2x4x2x128xf32, #tpu.memory_space<vmem>>, vector<1x1x2x128xf32>,
    return
  }
  func.func @transform_0(%arg0: i32, %arg1: i32) -> (i32, i32) {
    %c0_i32 = arith.constant 0 : i32
    %c0_i32_0 = arith.constant 0 : i32
    %c0_i32_1 = arith.constant 0 : i32
    return %c0_i32, %c0_i32_0 : i32, i32
  }
  func.func @transform_1(%arg0: i32, %arg1: i32) -> i32 {
    %c0_i32 = arith.constant 0 : i32
    %c0_i32_0 = arith.constant 0 : i32
    return %c0_i32 : i32
  }
  func.func @transform_2(%arg0: i32, %arg1: i32) -> (i32, i32, i32, i32) {
    %c0_i32 = arith.constant 0 : i32
    %c0_i32_0 = arith.constant 0 : i32
    %c0_i32_1 = arith.constant 0 : i32
    return %arg0, %c0_i32, %arg1, %c0_i32_0 : i32, i32, i32, i32
  }
  func.func @transform_3(%arg0: i32, %arg1: i32) -> (i32, i32, i32, i32) {
    %c0_i32 = arith.constant 0 : i32
    %c0_i32_0 = arith.constant 0 : i32
    %c0_i32_1 = arith.constant 0 : i32
    return %arg0, %c0_i32, %arg1, %c0_i32_0 : i32, i32, i32, i32
  }
}

</mosaic_0001>

<llo_original>
// kernel: tpu_custom_call.1
$region0: #{tpu_custom_call.1}
  #allocation0 [shape = 'u32[]', space=smem, size = 0x4, offset = 0x4, fixed_abs, tag = 'smem constant byte address 0x4 - core index']
  #allocation1 [shape = 'u32[144,128]{1,0:T(1,128)}', space=vmem, size = 0x12000, scoped, tag = 'internal scratch']
  %s0 = inlined_call_operand.hbm [shape: f32[4,4], index: 0, kind: input, shape index: {}]
  %s1 = inlined_call_operand.vmem [shape: f32[4], index: 1, kind: input, shape index: {}]
  %s2 = inlined_call_operand.hbm [shape: f32[2,4,2,128], index: 2, kind: input, shape index: {}]
  %s3 = inlined_call_operand.hbm [shape: f32[2,4,2,128], index: 3, kind: output, shape index: {}]
  %s4 = sld [smem:[#allocation0]]
  $region34: #{tpu_custom_call.1} parent=0
    _
  %s6 = ssub.s32 1, %s4
  %s7 = scalar_select 0, %s6, %s4
  $region1: #{tpu_custom_call.1} parent=0
    #allocation2 [shape = 'u8[2048]{0}', space=smem, size = 0x800, scoped, tag = 'input window, operand 0, single buffered']
    #allocation3 [shape = 's32[1]{0}', space=sflag, size = 0x4, scoped, tag = 'scoped memory for tpu_custom_call.1']
    #allocation4 [shape = 's32[1]{0}', space=sflag, size = 0x4, scoped, tag = 'scoped memory for tpu_custom_call.1']
    #allocation5 [shape = 's32[1]{0}', space=sflag, size = 0x4, scoped, tag = 'scoped memory for tpu_custom_call.1']
    #allocation6 [shape = 's32[1]{0}', space=sflag, size = 0x4, scoped, tag = 'scoped memory for tpu_custom_call.1']
    #allocation7 [shape = 'u8[512]{0}', space=smem, size = 0x200, scoped, tag = 'input window, operand 1, single buffered']
    #allocation8 [shape = 'u8[8192]{0}', space=vmem, size = 0x2000, scoped, tag = 'input window, operand 2, single buffered']
    #allocation9 [shape = 'u8[8192]{0}', space=vmem, size = 0x2000, scoped, tag = 'output window, operand 0, single buffered']
    %8 = vsyncpa [#allocation5], 0
    %9 = vsyncpa [#allocation6], 0
    %10 = vsyncpa [#allocation3], 0
    %11 = vsyncpa [#allocation4], 0
    // Predicated region
    $region2: #{tpu_custom_call.1} parent=1 // pred_check
      _
    $region3: #{tpu_custom_call.1} parent=1 // pred_check_branch
      %13 = sbr.rel (0) target = $region5
    $region4: #{tpu_custom_call.1} parent=1 // pred_region
      %s15 = ssub.s32 64, 64
      %16 = vsyncadd [#allocation5], %s15
      %19 = dma.hbm_to_smem %s0, 64, [#allocation2], [#allocation5]
    $region5: #{tpu_custom_call.1} parent=1 // pred_fallthru
      _
    // Predicated region
    $region6: #{tpu_custom_call.1} parent=1 // pred_check
      _
    $region7: #{tpu_custom_call.1} parent=1 // pred_check_branch
      %21 = sbr.rel (0) target = $region9
    $region8: #{tpu_custom_call.1} parent=1 // pred_region
      %s23 = ssub.s32 16, 16
      %24 = vsyncadd [#allocation6], %s23
      %s26 = sshll.u32 %s1, 4
      %s27 = int_to_ptr.vmem [resolvable:$true] %s26
      %29 = dma.vmem_to_smem %s27, 16, [#allocation7], [#allocation6]
    $region9: #{tpu_custom_call.1} parent=1 // pred_fallthru
      _
    // Predicated region
    $region10: #{tpu_custom_call.1} parent=1 // pred_check
      _
    $region11: #{tpu_custom_call.1} parent=1 // pred_check_branch
      %31 = sbr.rel (0) target = $region13
    $region12: #{tpu_custom_call.1} parent=1 // pred_region
      %s33 = ssub.s32 256, 256
      %34 = vsyncadd [#allocation3], %s33
      %s35 = sshll.u32 [#allocation8], 4
      %s36 = int_to_ptr.vmem [resolvable:$true] %s35
      %41 = dma.hbm_to_vmem [thread:$0]  %s2, 256, %s36, [#allocation3], 32, 32, 2
    $region13: #{tpu_custom_call.1} parent=1 // pred_fallthru
      _
    // Predicated region
    $region14: #{tpu_custom_call.1} parent=1 // pred_check
      _
    $region15: #{tpu_custom_call.1} parent=1 // pred_check_branch
      %43 = sbr.rel (0) target = $region17
    $region16: #{tpu_custom_call.1} parent=1 // pred_region
      %44 = dma.done [#allocation5], 64
    $region17: #{tpu_custom_call.1} parent=1 // pred_fallthru
      _
    // Predicated region
    $region18: #{tpu_custom_call.1} parent=1 // pred_check
      _
    $region19: #{tpu_custom_call.1} parent=1 // pred_check_branch
      %46 = sbr.rel (0) target = $region21
    $region20: #{tpu_custom_call.1} parent=1 // pred_region
      %47 = dma.done [#allocation6], 16
    $region21: #{tpu_custom_call.1} parent=1 // pred_fallthru
      _
    // Predicated region
    $region22: #{tpu_custom_call.1} parent=1 // pred_check
      _
    $region23: #{tpu_custom_call.1} parent=1 // pred_check_branch
      %49 = sbr.rel (0) target = $region25
    $region24: #{tpu_custom_call.1} parent=1 // pred_region
      %50 = dma.done [#allocation3], 256
    $region25: #{tpu_custom_call.1} parent=1 // pred_fallthru
      _
    %51 = sfence
    %v52 = vld [vmem:[#allocation8] sm:$0x3]
    %s53 = sld [smem:[#allocation2]]
    %v54 = vstv %s53
    %v55 = vmul.f32 %v52, %v54
    %s56 = scalar_lea.vmem [#allocation8], 2
    %v57 = vld [vmem:[%s56] sm:$0x3]
    %s58 = sld [smem:[#allocation2 + $0x1]]
    %v59 = vstv %s58
    %v60 = vmul.f32 %v57, %v59
    %v61 = vadd.f32 %v55, %v60
    %s62 = scalar_lea.vmem [#allocation8], 4
    %v63 = vld [vmem:[%s62] sm:$0x3]
    %s64 = sld [smem:[#allocation2 + $0x2]]
    %v65 = vstv %s64
    %v66 = vmul.f32 %v63, %v65
    %v67 = vadd.f32 %v61, %v66
    %s68 = scalar_lea.vmem [#allocation8], 6
    %v69 = vld [vmem:[%s68] sm:$0x3]
    %s70 = sld [smem:[#allocation2 + $0x3]]
    %v71 = vstv %s70
    %v72 = vmul.f32 %v69, %v71
    %v73 = vadd.f32 %v67, %v72
    %s74 = sld [smem:[#allocation7]]
    %v75 = vstv %s74
    %v76 = vadd.f32 %v73, %v75
    %77 = vst [vmem:[#allocation9] sm:$0x3] %v76
    %v78 = vld [vmem:[#allocation8] sm:$0x3]
    %s79 = sld [smem:[#allocation2 + $0x80]]
    %v80 = vstv %s79
    %v81 = vmul.f32 %v78, %v80
    %v82 = vld [vmem:[%s56] sm:$0x3]
    %s83 = sld [smem:[#allocation2 + $0x81]]
    %v84 = vstv %s83
    %v85 = vmul.f32 %v82, %v84
    %v86 = vadd.f32 %v81, %v85
    %v87 = vld [vmem:[%s62] sm:$0x3]
    %s88 = sld [smem:[#allocation2 + $0x82]]
    %v89 = vstv %s88
    %v90 = vmul.f32 %v87, %v89
    %v91 = vadd.f32 %v86, %v90
    %v92 = vld [vmem:[%s68] sm:$0x3]
    %s93 = sld [smem:[#allocation2 + $0x83]]
    %v94 = vstv %s93
    %v95 = vmul.f32 %v92, %v94
    %v96 = vadd.f32 %v91, %v95
    %s97 = sld [smem:[#allocation7 + $0x1]]
    %v98 = vstv %s97
    %v99 = vadd.f32 %v96, %v98
    %s100 = scalar_lea.vmem [#allocation9], 2
    %101 = vst [vmem:[%s100] sm:$0x3] %v99
    %v102 = vld [vmem:[#allocation8] sm:$0x3]
    %s103 = sld [smem:[#allocation2 + $0x100]]
    %v104 = vstv %s103
    %v105 = vmul.f32 %v102, %v104
    %v106 = vld [vmem:[%s56] sm:$0x3]
    %s107 = sld [smem:[#allocation2 + $0x101]]
    %v108 = vstv %s107
    %v109 = vmul.f32 %v106, %v108
    %v110 = vadd.f32 %v105, %v109
    %v111 = vld [vmem:[%s62] sm:$0x3]
    %s112 = sld [smem:[#allocation2 + $0x102]]
    %v113 = vstv %s112
    %v114 = vmul.f32 %v111, %v113
    %v115 = vadd.f32 %v110, %v114
    %v116 = vld [vmem:[%s68] sm:$0x3]
    %s117 = sld [smem:[#allocation2 + $0x103]]
    %v118 = vstv %s117
    %v119 = vmul.f32 %v116, %v118
    %v120 = vadd.f32 %v115, %v119
    %s121 = sld [smem:[#allocation7 + $0x2]]
    %v122 = vstv %s121
    %v123 = vadd.f32 %v120, %v122
    %s124 = scalar_lea.vmem [#allocation9], 4
    %125 = vst [vmem:[%s124] sm:$0x3] %v123
    %v126 = vld [vmem:[#allocation8] sm:$0x3]
    %s127 = sld [smem:[#allocation2 + $0x180]]
    %v128 = vstv %s127
    %v129 = vmul.f32 %v126, %v128
    %v130 = vld [vmem:[%s56] sm:$0x3]
    %s131 = sld [smem:[#allocation2 + $0x181]]
    %v132 = vstv %s131
    %v133 = vmul.f32 %v130, %v132
    %v134 = vadd.f32 %v129, %v133
    %v135 = vld [vmem:[%s62] sm:$0x3]
    %s136 = sld [smem:[#allocation2 + $0x182]]
    %v137 = vstv %s136
    %v138 = vmul.f32 %v135, %v137
    %v139 = vadd.f32 %v134, %v138
    %v140 = vld [vmem:[%s68] sm:$0x3]
    %s141 = sld [smem:[#allocation2 + $0x183]]
    %v142 = vstv %s141
    %v143 = vmul.f32 %v140, %v142
    %v144 = vadd.f32 %v139, %v143
    %s145 = sld [smem:[#allocation7 + $0x3]]
    %v146 = vstv %s145
    %v147 = vadd.f32 %v144, %v146
    %s148 = scalar_lea.vmem [#allocation9], 6
    %149 = vst [vmem:[%s148] sm:$0x3] %v147
    %s150 = scalar_lea.vmem [#allocation8], 8
    %v151 = vld [vmem:[%s150] sm:$0x3]
    %s152 = sld [smem:[#allocation2]]
    %v153 = vstv %s152
    %v154 = vmul.f32 %v151, %v153
    %s155 = scalar_lea.vmem [#allocation8], 10
    %v156 = vld [vmem:[%s155] sm:$0x3]
    %s157 = sld [smem:[#allocation2 + $0x1]]
    %v158 = vstv %s157
    %v159 = vmul.f32 %v156, %v158
    %v160 = vadd.f32 %v154, %v159
    %s161 = scalar_lea.vmem [#allocation8], 12
    %v162 = vld [vmem:[%s161] sm:$0x3]
    %s163 = sld [smem:[#allocation2 + $0x2]]
    %v164 = vstv %s163
    %v165 = vmul.f32 %v162, %v164
    %v166 = vadd.f32 %v160, %v165
    %s167 = scalar_lea.vmem [#allocation8], 14
    %v168 = vld [vmem:[%s167] sm:$0x3]
    %s169 = sld [smem:[#allocation2 + $0x3]]
    %v170 = vstv %s169
    %v171 = vmul.f32 %v168, %v170
    %v172 = vadd.f32 %v166, %v171
    %s173 = sld [smem:[#allocation7]]
    %v174 = vstv %s173
    %v175 = vadd.f32 %v172, %v174
    %s176 = scalar_lea.vmem [#allocation9], 8
    %177 = vst [vmem:[%s176] sm:$0x3] %v175
    %v178 = vld [vmem:[%s150] sm:$0x3]
    %s179 = sld [smem:[#allocation2 + $0x80]]
    %v180 = vstv %s179
    %v181 = vmul.f32 %v178, %v180
    %v182 = vld [vmem:[%s155] sm:$0x3]
    %s183 = sld [smem:[#allocation2 + $0x81]]
    %v184 = vstv %s183
    %v185 = vmul.f32 %v182, %v184
    %v186 = vadd.f32 %v181, %v185
    %v187 = vld [vmem:[%s161] sm:$0x3]
    %s188 = sld [smem:[#allocation2 + $0x82]]
    %v189 = vstv %s188
    %v190 = vmul.f32 %v187, %v189
    %v191 = vadd.f32 %v186, %v190
    %v192 = vld [vmem:[%s167] sm:$0x3]
    %s193 = sld [smem:[#allocation2 + $0x83]]
    %v194 = vstv %s193
    %v195 = vmul.f32 %v192, %v194
    %v196 = vadd.f32 %v191, %v195
    %s197 = sld [smem:[#allocation7 + $0x1]]
    %v198 = vstv %s197
    %v199 = vadd.f32 %v196, %v198
    %s200 = scalar_lea.vmem [#allocation9], 10
    %201 = vst [vmem:[%s200] sm:$0x3] %v199
    %v202 = vld [vmem:[%s150] sm:$0x3]
    %s203 = sld [smem:[#allocation2 + $0x100]]
    %v204 = vstv %s203
    %v205 = vmul.f32 %v202, %v204
    %v206 = vld [vmem:[%s155] sm:$0x3]
    %s207 = sld [smem:[#allocation2 + $0x101]]
    %v208 = vstv %s207
    %v209 = vmul.f32 %v206, %v208
    %v210 = vadd.f32 %v205, %v209
    %v211 = vld [vmem:[%s161] sm:$0x3]
    %s212 = sld [smem:[#allocation2 + $0x102]]
    %v213 = vstv %s212
    %v214 = vmul.f32 %v211, %v213
    %v215 = vadd.f32 %v210, %v214
    %v216 = vld [vmem:[%s167] sm:$0x3]
    %s217 = sld [smem:[#allocation2 + $0x103]]
    %v218 = vstv %s217
    %v219 = vmul.f32 %v216, %v218
    %v220 = vadd.f32 %v215, %v219
    %s221 = sld [smem:[#allocation7 + $0x2]]
    %v222 = vstv %s221
    %v223 = vadd.f32 %v220, %v222
    %s224 = scalar_lea.vmem [#allocation9], 12
    %225 = vst [vmem:[%s224] sm:$0x3] %v223
    %v226 = vld [vmem:[%s150] sm:$0x3]
    %s227 = sld [smem:[#allocation2 + $0x180]]
    %v228 = vstv %s227
    %v229 = vmul.f32 %v226, %v228
    %v230 = vld [vmem:[%s155] sm:$0x3]
    %s231 = sld [smem:[#allocation2 + $0x181]]
    %v232 = vstv %s231
    %v233 = vmul.f32 %v230, %v232
    %v234 = vadd.f32 %v229, %v233
    %v235 = vld [vmem:[%s161] sm:$0x3]
    %s236 = sld [smem:[#allocation2 + $0x182]]
    %v237 = vstv %s236
    %v238 = vmul.f32 %v235, %v237
    %v239 = vadd.f32 %v234, %v238
    %v240 = vld [vmem:[%s167] sm:$0x3]
    %s241 = sld [smem:[#allocation2 + $0x183]]
    %v242 = vstv %s241
    %v243 = vmul.f32 %v240, %v242
    %v244 = vadd.f32 %v239, %v243
    %s245 = sld [smem:[#allocation7 + $0x3]]
    %v246 = vstv %s245
    %v247 = vadd.f32 %v244, %v246
    %s248 = scalar_lea.vmem [#allocation9], 14
    %249 = vst [vmem:[%s248] sm:$0x3] %v247
    // Predicated region
    $region26: #{tpu_custom_call.1} parent=1 // pred_check
      _
    $region27: #{tpu_custom_call.1} parent=1 // pred_check_branch
      %251 = sbr.rel (0) target = $region29
    $region28: #{tpu_custom_call.1} parent=1 // pred_region
      %s253 = ssub.s32 256, 256
      %254 = vsyncadd [#allocation4], %s253
      %s255 = sshll.u32 [#allocation9], 4
      %s256 = int_to_ptr.vmem [resolvable:$true] %s255
      %261 = dma.vmem_to_hbm [thread:$0]  %s256, 256, %s3, [#allocation4], 32, 32, 2
    $region29: #{tpu_custom_call.1} parent=1 // pred_fallthru
      _
    // Predicated region
    $region30: #{tpu_custom_call.1} parent=1 // pred_check
      _
    $region31: #{tpu_custom_call.1} parent=1 // pred_check_branch
      %263 = sbr.rel (0) target = $region33
    $region32: #{tpu_custom_call.1} parent=1 // pred_region
      %264 = dma.done [#allocation4], 256
    $region33: #{tpu_custom_call.1} parent=1 // pred_fallthru
      _
    %265 = vsyncpa [#allocation3], 1
    %266 = vsyncpa [#allocation4], 1
    %267 = vsyncpa [#allocation5], 1
    %268 = vsyncpa [#allocation6], 1

</llo_original>
